<compile_context>
chip_gen: v7x
topology: tpu7x:2x2x1
jax: 0.10.0
libtpu: 0.0.40
codegen_flags: <defaults>
</compile_context>

<pallas_src>
import jax
import jax.numpy as jnp
from jax.experimental import pallas as pl
from jax.experimental.pallas import tpu as pltpu

# ----------------------------- static config ---------------------------------
BATCH = 2
D_MODEL = 32
D_TIME = 16
NUM_EXPERTS = 4
TOP_K = 2
D_STATE = 16
D_CONV = 4
EXPAND = 2
HEADDIM = 8
D_INNER = EXPAND * D_MODEL            # 64
NHEADS = D_INNER // HEADDIM           # 8
KAN_GRID = 8                          # grid points per input feature
INV_H = 1.5                           # rkhs_gaussian inverse bandwidth
RMS_EPS = 1e-6
XBC_DIM = D_INNER + 2 * D_STATE       # 96

# fused (pre-composed) projection, vreg-aligned column layout, padded to 256
PROJ_DIM = 256
OFF_X = 0                             # x   : 0:64
OFF_B = D_INNER                       # B   : 64:80
OFF_C = D_INNER + D_STATE             # C   : 80:96
OFF_Z = 128                           # z   : 128:192
OFF_DT = 192                          # dt  : 192:200

# row-stacked "misc" weight slab (128 lanes wide), section starts 8-aligned
WKD_ROWS = D_TIME * KAN_GRID          # 0:128   w_kd = w_kan @ w_delta  (128,8)
WOUT_START = WKD_ROWS                 # 128:192 w_out                   (64,32)
WOUT_END = WOUT_START + D_INNER
DTE_START = WOUT_END                  # 192:200 kron(I8, 1^T_8)         (8,64)
DTE_END = DTE_START + NHEADS
E1_START = 200                        # 200:204 kron(I4, 1^T_16)        (4,64)
E1_END = E1_START + NUM_EXPERTS
E2_START = 208                        # 208:272 tile(I16, (4,8))        (64,128)
E2_END = E2_START + NUM_EXPERTS * D_TIME
MISC_ROWS = E2_END                    # 272
MISC_COLS = 128

# vector slab rows (each row one bias/scale vector, zero-padded to 256 lanes)
ROW_W_ROUTER = 0    # (4,)
ROW_B_ROUTER = 1    # (4,)
ROW_OMEGA = 2       # (64,)
ROW_PHASE = 3       # (64,)
ROW_KAN_C = 4       # (128,)  RBF centers, grid-major layout
ROW_B_COMB = 5      # (256,)  composed projection bias (reordered layout)
ROW_CONV_W = 6      # (256,)  affine scale: conv last tap on x|B|C, 1.0 on z
ROW_CONV_B = 7      # (256,)  affine bias : conv bias on x|B|C, 0 elsewhere
ROW_DT_CONST = 8    # (8,)    b_delta + dt_bias (constant-folded)
ROW_D_SKIP = 9      # (64,)   D skip, head-expanded
ROW_RMS_W = 10      # (64,)
VEC_ROWS = 16
VEC_LANES = 256


# ------------------------------- kernel --------------------------------------
def continuous_mamba_block_kernel(uk_ref, tk_ref, tkm1_ref, w_comb_ref, wb_ref,
                                  vec_ref, hk_ref, ew_ref, sel_ref):
    f32 = jnp.float32
    bp = uk_ref.shape[0]

    def vrow(i, n):
        return vec_ref[i:i + 1, 0:n]                       # (1, n) static slice

    def silu(x):
        # sigmoid denominator via approx EUP reciprocal (free slot)
        return x * pl.reciprocal(1.0 + jnp.exp(-x), approx=True)

    def softplus(x):
        return jnp.maximum(x, 0.0) + jnp.log1p(jnp.exp(-jnp.abs(x)))

    def mm(a, b):
        return jnp.dot(a, b, preferred_element_type=f32)

    uk = uk_ref[...]                                        # (bp, 32)
    # stack [tk ; tk_prev] on the sublane axis -> encoder runs once for both
    t2 = jnp.concatenate([tk_ref[...], tkm1_ref[...]], axis=0)   # (2bp, 1)

    # ---------------- K-MOTE router (tk and tk_prev stacked) -----------------
    # in_features == 1 -> broadcast multiply instead of a K=1 matmul
    logits = t2 * vrow(ROW_W_ROUTER, NUM_EXPERTS) + vrow(ROW_B_ROUTER, NUM_EXPERTS)
    m = jnp.max(logits, axis=-1, keepdims=True)
    ex = jnp.exp(logits - m)
    weights = ex * pl.reciprocal(jnp.sum(ex, axis=-1, keepdims=True), approx=True)
    # top-k selection mask: expert selected iff fewer than TOP_K experts beat it
    # TODO(synk): strict '>' rank count matches torch.topk except on exact ties.
    count = jnp.zeros_like(weights)
    for j in range(NUM_EXPERTS):
        count += (weights[:, j:j + 1] > weights).astype(f32)
    sel_mask = (count < float(TOP_K)).astype(f32)
    mw = weights * sel_mask
    renorm = mw * pl.reciprocal(jnp.sum(mw, axis=-1, keepdims=True) + 1e-9,
                                approx=True)

    # -------- Fourier experts -> mixed embedding -> RBF input (MXU expands) ---
    emb = jnp.sin(t2 * vrow(ROW_OMEGA, NUM_EXPERTS * D_TIME)
                  + vrow(ROW_PHASE, NUM_EXPERTS * D_TIME))         # (2bp, 64)
    # expand renorm (2bp,4) across each expert's 16 lanes via kron(I4, 1^T_16)
    renorm_full = mm(renorm, wb_ref[E1_START:E1_END, 0:NUM_EXPERTS * D_TIME])
    mixed = renorm_full * emb                                      # (2bp, 64)
    # sum over experts AND 8-way grid tiling in one constant matmul (64 -> 128)
    xr = mm(mixed, wb_ref[E2_START:E2_END, 0:D_TIME * KAN_GRID])   # (2bp, 128)

    # ------------- FasterKAN (rkhs_gaussian), grid-major basis ---------------
    diff = (xr - vrow(ROW_KAN_C, D_TIME * KAN_GRID)) * INV_H
    phi = jnp.exp(-(diff * diff))                                  # (2bp, 128)
    # b_kan cancels in kan(tk) - kan(tk_prev); w_kan @ w_delta pre-composed
    phi_diff = phi[0:bp, :] - phi[bp:2 * bp, :]                    # (bp, 128)
    dt_mod = mm(phi_diff, wb_ref[0:WKD_ROWS, 0:NHEADS])            # (bp, 8)

    # ---------------- composed input_proj + Mamba in_proj --------------------
    proj = mm(uk, w_comb_ref[...]) + vrow(ROW_B_COMB, PROJ_DIM)    # (bp, 256)
    # one fused affine + SiLU: conv last-tap on x|B|C lanes, identity on z lanes
    act_all = silu(proj * vrow(ROW_CONV_W, PROJ_DIM) + vrow(ROW_CONV_B, PROJ_DIM))
    x_c = act_all[:, OFF_X:OFF_X + D_INNER]                        # (bp, 64)
    B_c = act_all[:, OFF_B:OFF_B + D_STATE]                        # (bp, 16)
    C_c = act_all[:, OFF_C:OFF_C + D_STATE]                        # (bp, 16)
    z_act = act_all[:, OFF_Z:OFF_Z + D_INNER]                      # silu(z)
    dt_raw = proj[:, OFF_DT:OFF_DT + NHEADS]                       # (bp, 8)

    # dt dynamically modulated by the K-MOTE delta-t embedding
    dt = softplus(dt_raw + dt_mod + vrow(ROW_DT_CONST, NHEADS))    # (bp, 8)
    # head expansion on the idle MXU via constant kron(I8, 1^T_8)
    dt_full = mm(dt, wb_ref[DTE_START:DTE_END, 0:D_INNER])         # (bp, 64)

    # single-step SSM, zero initial state:  y = (C.B) * dt * x + D * x
    # TODO(synk): exp(dt*A) only multiplies the (zero) previous state for
    #             seq_len==1, so A_log has no effect on this forward.
    cb = jnp.sum(C_c * B_c, axis=-1, keepdims=True)                # (bp, 1)
    y = x_c * (dt_full * cb + vrow(ROW_D_SKIP, D_INNER))

    # gated RMSNorm + out_proj
    yg = y * z_act
    ms = jnp.mean(yg * yg, axis=-1, keepdims=True)
    y_norm = yg * jax.lax.rsqrt(ms + RMS_EPS) * vrow(ROW_RMS_W, D_INNER)
    hk = mm(y_norm, wb_ref[WOUT_START:WOUT_END, 0:D_MODEL])        # (bp, 32)

    # three direct stores -> no in-kernel concatenate / lane rotates
    hk_ref[...] = hk
    # TODO(synk): returning the dense softmax weights (not the masked renorm)
    #             matches the previously accepted behavior of the module.
    ew_ref[...] = weights[0:bp, :]
    sel_ref[...] = sel_mask[0:bp, :]


# ------------------------------ wrapper ---------------------------------------
@jax.jit
def continuous_mamba_block(uk, tk, tkm1, params):
    f32 = jnp.float32
    b = uk.shape[0]
    bp = max(8, -(-b // 8) * 8)          # pad batch to >= 8 sublanes
    pad = bp - b

    uk_p = jnp.pad(uk.astype(f32), ((0, pad), (0, 0)))
    tk_p = jnp.pad(tk.astype(f32), ((0, pad), (0, 0)))
    tkm1_p = jnp.pad(tkm1.astype(f32), ((0, pad), (0, 0)))

    hk, ew, sel = pl.pallas_call(
        continuous_mamba_block_kernel,
        out_shape=(jax.ShapeDtypeStruct((bp, D_MODEL), f32),
                   jax.ShapeDtypeStruct((bp, NUM_EXPERTS), f32),
                   jax.ShapeDtypeStruct((bp, NUM_EXPERTS), f32)),
        compiler_params=pltpu.CompilerParams(vmem_limit_bytes=4 * 1024 * 1024),
    )(uk_p, tk_p, tkm1_p, *params)

    return hk[:b], ew[:b], sel[:b]


# ------------------------------ params ----------------------------------------
def make_params(key):
    ks = jax.random.split(key, 21)
    n = lambda k, shape, s=0.1: jax.random.normal(k, shape, jnp.float32) * s

    # input_proj
    w_ip = n(ks[0], (D_MODEL, D_MODEL))
    b_ip = n(ks[1], (D_MODEL,), 0.01)
    # K-MOTE router + Fourier experts
    w_router = n(ks[2], (NUM_EXPERTS,), 1.0)
    b_router = n(ks[3], (NUM_EXPERTS,), 0.1)
    omega = n(ks[4], (NUM_EXPERTS * D_TIME,), 1.0)
    phase = n(ks[5], (NUM_EXPERTS * D_TIME,), 1.0)
    # FasterKAN rkhs_gaussian: grid-major basis layout (row = g*D_time + d)
    grid = jnp.linspace(-2.0, 2.0, KAN_GRID, dtype=jnp.float32)
    kan_c = jnp.repeat(grid, D_TIME)                             # (128,)
    w_kan = n(ks[6], (D_TIME * KAN_GRID, D_TIME))
    # (ks[7] reserved: b_kan cancels in kan(tk)-kan(tk_prev), so it is dropped)
    # Mamba in_proj splits
    w_z = n(ks[8], (D_MODEL, D_INNER))
    w_x = n(ks[9], (D_MODEL, D_INNER))
    w_B = n(ks[10], (D_MODEL, D_STATE))
    w_C = n(ks[11], (D_MODEL, D_STATE))
    w_dt = n(ks[12], (D_MODEL, NHEADS))
    # depthwise conv: only the last of D_CONV taps matters for seq_len==1
    conv_w = jnp.concatenate([n(ks[13], (D_INNER,), 0.5),
                              n(ks[14], (D_STATE,), 0.5),
                              n(ks[15], (D_STATE,), 0.5)])       # (96,) x|B|C
    conv_b = n(ks[16], (XBC_DIM,), 0.01)
    # dt modulation + dt bias (constant-folded together)
    w_delta = n(ks[17], (D_TIME, NHEADS))
    b_delta = n(ks[18], (NHEADS,), 0.01)
    dt_bias = jnp.full((NHEADS,), -1.0, jnp.float32)
    dt_const = b_delta + dt_bias
    # skip D (per head, expanded), RMSNorm weight, out_proj
    d_head = 1.0 + n(ks[19], (NHEADS,), 0.1)
    d_full = jnp.repeat(d_head, HEADDIM)                         # (64,)
    rms_w = jnp.ones((D_INNER,), jnp.float32)
    w_out = n(ks[20], (D_INNER, D_MODEL))

    # --- host-side algebra: composed projection with vreg-aligned columns ----
    w_in_re = jnp.zeros((D_MODEL, PROJ_DIM), jnp.float32)
    w_in_re = w_in_re.at[:, OFF_X:OFF_X + D_INNER].set(w_x)
    w_in_re = w_in_re.at[:, OFF_B:OFF_B + D_STATE].set(w_B)
    w_in_re = w_in_re.at[:, OFF_C:OFF_C + D_STATE].set(w_C)
    w_in_re = w_in_re.at[:, OFF_Z:OFF_Z + D_INNER].set(w_z)
    w_in_re = w_in_re.at[:, OFF_DT:OFF_DT + NHEADS].set(w_dt)
    w_comb = w_ip @ w_in_re                                      # (32, 256)
    b_comb = b_ip @ w_in_re                                      # (256,)

    # --- host-side algebra: composed KAN->delta weight + structured expanders -
    w_kd = w_kan @ w_delta                                       # (128, 8)
    dt_expand = jnp.kron(jnp.eye(NHEADS, dtype=jnp.float32),
                         jnp.ones((1, HEADDIM), jnp.float32))    # (8, 64)
    e1 = jnp.kron(jnp.eye(NUM_EXPERTS, dtype=jnp.float32),
                  jnp.ones((1, D_TIME), jnp.float32))            # (4, 64)
    e2 = jnp.tile(jnp.eye(D_TIME, dtype=jnp.float32),
                  (NUM_EXPERTS, KAN_GRID))                       # (64, 128)

    wb = jnp.zeros((MISC_ROWS, MISC_COLS), jnp.float32)
    wb = wb.at[0:WKD_ROWS, 0:NHEADS].set(w_kd)
    wb = wb.at[WOUT_START:WOUT_END, 0:D_MODEL].set(w_out)
    wb = wb.at[DTE_START:DTE_END, 0:D_INNER].set(dt_expand)
    wb = wb.at[E1_START:E1_END, 0:NUM_EXPERTS * D_TIME].set(e1)
    wb = wb.at[E2_START:E2_END, 0:D_TIME * KAN_GRID].set(e2)

    # --- fused affine scale/bias covering x|B|C (conv) and z (identity) ------
    conv_scale = jnp.zeros((PROJ_DIM,), jnp.float32)
    conv_scale = conv_scale.at[0:XBC_DIM].set(conv_w)
    conv_scale = conv_scale.at[OFF_Z:OFF_Z + D_INNER].set(1.0)
    conv_bias = jnp.zeros((PROJ_DIM,), jnp.float32)
    conv_bias = conv_bias.at[0:XBC_DIM].set(conv_b)

    # --- slab: all bias / scale vectors, one per (256-lane) row --------------
    def row(v):
        v = jnp.asarray(v, jnp.float32).reshape(-1)
        return jnp.pad(v, (0, VEC_LANES - v.shape[0]))

    rows = [jnp.zeros((VEC_LANES,), jnp.float32) for _ in range(VEC_ROWS)]
    rows[ROW_W_ROUTER] = row(w_router)
    rows[ROW_B_ROUTER] = row(b_router)
    rows[ROW_OMEGA] = row(omega)
    rows[ROW_PHASE] = row(phase)
    rows[ROW_KAN_C] = row(kan_c)
    rows[ROW_B_COMB] = row(b_comb)
    rows[ROW_CONV_W] = row(conv_scale)
    rows[ROW_CONV_B] = row(conv_bias)
    rows[ROW_DT_CONST] = row(dt_const)
    rows[ROW_D_SKIP] = row(d_full)
    rows[ROW_RMS_W] = row(rms_w)
    vecs = jnp.stack(rows, axis=0)                               # (16, 256)

    return (w_comb, wb, vecs)


if __name__ == "__main__":
    key = jax.random.PRNGKey(0)
    k_uk, k_t = jax.random.split(key)
    uk = jax.random.normal(k_uk, (BATCH, D_MODEL), jnp.float32)
    tk_prev = jnp.abs(jax.random.normal(k_t, (BATCH, 1), jnp.float32))
    tk_cur = tk_prev + 0.25

    params = make_params(jax.random.PRNGKey(1))

    hk, expert_weights, expert_mask = continuous_mamba_block(uk, tk_cur, tk_prev, params)
    jax.block_until_ready((hk, expert_weights, expert_mask))

    assert hk.shape == (BATCH, D_MODEL)
    assert expert_weights.shape == (BATCH, NUM_EXPERTS)
    assert expert_mask.shape == (BATCH, NUM_EXPERTS)
    assert bool(jnp.all(jnp.isfinite(hk)))
    assert bool(jnp.all(jnp.isfinite(expert_weights)))
    print("KERNEL_OK")
</pallas_src>

<mosaic_0001>
module attributes {stable_mosaic.version = 11 : i64} {
  func.func @continuous_mamba_block_kernel(%arg0: memref<8x32xf32, #tpu.memory_space<vmem>>, %arg1: memref<8x1xf32, #tpu.memory_space<vmem>>, %arg2: memref<8x1xf32, #tpu.memory_space<vmem>>, %arg3: memref<32x256xf32, #tpu.memory_space<vmem>>, %arg4: memref<272x128xf32, #tpu.memory_space<vmem>>, %arg5: memref<16x256xf32, #tpu.memory_space<vmem>>, %arg6: memref<8x32xf32, #tpu.memory_space<vmem>>, %arg7: memref<8x4xf32, #tpu.memory_space<vmem>>, %arg8: memref<8x4xf32, #tpu.memory_space<vmem>>) attributes {dimension_semantics = [], scalar_prefetch = 0 : i64, scratch_operands = 0 : i64, tpu.core_type = #tpu.core_type<tc>} {
    %c0 = arith.constant 0 : index
    %c0_0 = arith.constant 0 : index
    %0 = vector.load %arg0[%c0, %c0_0] : memref<8x32xf32, #tpu.memory_space<vmem>>, vector<8x32xf32>
    %c0_1 = arith.constant 0 : index
    %c0_2 = arith.constant 0 : index
    %1 = vector.load %arg1[%c0_1, %c0_2] : memref<8x1xf32, #tpu.memory_space<vmem>>, vector<8x1xf32>
    %c0_3 = arith.constant 0 : index
    %c0_4 = arith.constant 0 : index
    %2 = vector.load %arg2[%c0_3, %c0_4] : memref<8x1xf32, #tpu.memory_space<vmem>>, vector<8x1xf32>
    %3 = tpu.concatenate %1, %2 in 0 : vector<8x1xf32>, vector<8x1xf32> -> vector<16x1xf32>
    %c0_5 = arith.constant 0 : index
    %c0_6 = arith.constant 0 : index
    %4 = vector.load %arg5[%c0_5, %c0_6] : memref<16x256xf32, #tpu.memory_space<vmem>>, vector<1x4xf32>
    %5 = vector.broadcast %3 : vector<16x1xf32> to vector<16x4xf32>
    %6 = vector.broadcast %4 : vector<1x4xf32> to vector<16x4xf32>
    %7 = arith.mulf %5, %6 : vector<16x4xf32>
    %c1 = arith.constant 1 : index
    %c0_7 = arith.constant 0 : index
    %8 = vector.load %arg5[%c1, %c0_7] : memref<16x256xf32, #tpu.memory_space<vmem>>, vector<1x4xf32>
    %9 = vector.broadcast %8 : vector<1x4xf32> to vector<16x4xf32>
    %10 = arith.addf %7, %9 : vector<16x4xf32>
    %cst = arith.constant dense<0xFF800000> : vector<16xf32>
    %11 = vector.multi_reduction <maximumf>, %10, %cst [1] : vector<16x4xf32> to vector<16xf32>
    %12 = vector.shape_cast %11 : vector<16xf32> to vector<16x1xf32>
    %13 = vector.broadcast %12 : vector<16x1xf32> to vector<16x4xf32>
    %14 = arith.subf %10, %13 : vector<16x4xf32>
    %15 = math.exp %14 : vector<16x4xf32>
    %cst_8 = arith.constant dense<0.000000e+00> : vector<16xf32>
    %16 = vector.multi_reduction <add>, %15, %cst_8 [1] : vector<16x4xf32> to vector<16xf32>
    %17 = vector.shape_cast %16 : vector<16xf32> to vector<16x1xf32>
    %18 = tpu.reciprocal %17 {approx = true} : vector<16x1xf32> -> vector<16x1xf32>
    %19 = vector.broadcast %18 : vector<16x1xf32> to vector<16x4xf32>
    %20 = arith.mulf %15, %19 : vector<16x4xf32>
    %cst_9 = arith.constant 0.000000e+00 : f32
    %21 = vector.broadcast %cst_9 : f32 to vector<16x4xf32>
    %22 = vector.extract_strided_slice %20 {offsets = [0, 0], sizes = [16, 1], strides = [1, 1]} : vector<16x4xf32> to vector<16x1xf32>
    %23 = vector.broadcast %22 : vector<16x1xf32> to vector<16x4xf32>
    %24 = arith.cmpf ogt, %23, %20 : vector<16x4xf32>
    %25 = arith.extui %24 : vector<16x4xi1> to vector<16x4xi32>
    %26 = arith.sitofp %25 : vector<16x4xi32> to vector<16x4xf32>
    %27 = arith.addf %21, %26 : vector<16x4xf32>
    %28 = vector.extract_strided_slice %20 {offsets = [0, 1], sizes = [16, 1], strides = [1, 1]} : vector<16x4xf32> to vector<16x1xf32>
    %29 = vector.broadcast %28 : vector<16x1xf32> to vector<16x4xf32>
    %30 = arith.cmpf ogt, %29, %20 : vector<16x4xf32>
    %31 = arith.extui %30 : vector<16x4xi1> to vector<16x4xi32>
    %32 = arith.sitofp %31 : vector<16x4xi32> to vector<16x4xf32>
    %33 = arith.addf %27, %32 : vector<16x4xf32>
    %34 = vector.extract_strided_slice %20 {offsets = [0, 2], sizes = [16, 1], strides = [1, 1]} : vector<16x4xf32> to vector<16x1xf32>
    %35 = vector.broadcast %34 : vector<16x1xf32> to vector<16x4xf32>
    %36 = arith.cmpf ogt, %35, %20 : vector<16x4xf32>
    %37 = arith.extui %36 : vector<16x4xi1> to vector<16x4xi32>
    %38 = arith.sitofp %37 : vector<16x4xi32> to vector<16x4xf32>
    %39 = arith.addf %33, %38 : vector<16x4xf32>
    %40 = vector.extract_strided_slice %20 {offsets = [0, 3], sizes = [16, 1], strides = [1, 1]} : vector<16x4xf32> to vector<16x1xf32>
    %41 = vector.broadcast %40 : vector<16x1xf32> to vector<16x4xf32>
    %42 = arith.cmpf ogt, %41, %20 : vector<16x4xf32>
    %43 = arith.extui %42 : vector<16x4xi1> to vector<16x4xi32>
    %44 = arith.sitofp %43 : vector<16x4xi32> to vector<16x4xf32>
    %45 = arith.addf %39, %44 : vector<16x4xf32>
    %cst_10 = arith.constant 2.000000e+00 : f32
    %46 = vector.broadcast %cst_10 : f32 to vector<16x4xf32>
    %47 = arith.cmpf olt, %45, %46 : vector<16x4xf32>
    %48 = arith.extui %47 : vector<16x4xi1> to vector<16x4xi32>
    %49 = arith.sitofp %48 : vector<16x4xi32> to vector<16x4xf32>
    %50 = arith.mulf %20, %49 : vector<16x4xf32>
    %cst_11 = arith.constant dense<0.000000e+00> : vector<16xf32>
    %51 = vector.multi_reduction <add>, %50, %cst_11 [1] : vector<16x4xf32> to vector<16xf32>
    %52 = vector.shape_cast %51 : vector<16xf32> to vector<16x1xf32>
    %cst_12 = arith.constant 9.99999971E-10 : f32
    %53 = vector.broadcast %cst_12 : f32 to vector<16x1xf32>
    %54 = arith.addf %52, %53 : vector<16x1xf32>
    %55 = tpu.reciprocal %54 {approx = true} : vector<16x1xf32> -> vector<16x1xf32>
    %56 = vector.broadcast %55 : vector<16x1xf32> to vector<16x4xf32>
    %57 = arith.mulf %50, %56 : vector<16x4xf32>
    %c2 = arith.constant 2 : index
    %c0_13 = arith.constant 0 : index
    %58 = vector.load %arg5[%c2, %c0_13] : memref<16x256xf32, #tpu.memory_space<vmem>>, vector<1x64xf32>
    %59 = vector.broadcast %3 : vector<16x1xf32> to vector<16x64xf32>
    %60 = vector.broadcast %58 : vector<1x64xf32> to vector<16x64xf32>
    %61 = arith.mulf %59, %60 : vector<16x64xf32>
    %c3 = arith.constant 3 : index
    %c0_14 = arith.constant 0 : index
    %62 = vector.load %arg5[%c3, %c0_14] : memref<16x256xf32, #tpu.memory_space<vmem>>, vector<1x64xf32>
    %63 = vector.broadcast %62 : vector<1x64xf32> to vector<16x64xf32>
    %64 = arith.addf %61, %63 : vector<16x64xf32>
    %65 = math.sin %64 : vector<16x64xf32>
    %c200 = arith.constant 200 : index
    %c0_15 = arith.constant 0 : index
    %66 = vector.load %arg4[%c200, %c0_15] : memref<272x128xf32, #tpu.memory_space<vmem>>, vector<4x64xf32>
    %cst_16 = arith.constant dense<0.000000e+00> : vector<16x64xf32>
    %67 = tpu.matmul %57, %66, %cst_16 {dimension_numbers = #tpu.dot_dimension_numbers<[1], [0], [0], [1], [0, 0, 1, 1], [], []>} : vector<16x4xf32>, vector<4x64xf32>, vector<16x64xf32> -> vector<16x64xf32>
    %68 = arith.mulf %67, %65 : vector<16x64xf32>
    %c208 = arith.constant 208 : index
    %c0_17 = arith.constant 0 : index
    %69 = vector.load %arg4[%c208, %c0_17] : memref<272x128xf32, #tpu.memory_space<vmem>>, vector<64x128xf32>
    %cst_18 = arith.constant dense<0.000000e+00> : vector<16x128xf32>
    %70 = tpu.matmul %68, %69, %cst_18 {dimension_numbers = #tpu.dot_dimension_numbers<[1], [0], [0], [1], [0, 0, 1, 1], [], []>} : vector<16x64xf32>, vector<64x128xf32>, vector<16x128xf32> -> vector<16x128xf32>
    %c4 = arith.constant 4 : index
    %c0_19 = arith.constant 0 : index
    %71 = vector.load %arg5[%c4, %c0_19] : memref<16x256xf32, #tpu.memory_space<vmem>>, vector<1x128xf32>
    %72 = vector.broadcast %71 : vector<1x128xf32> to vector<16x128xf32>
    %73 = arith.subf %70, %72 : vector<16x128xf32>
    %cst_20 = arith.constant 1.500000e+00 : f32
    %74 = vector.broadcast %cst_20 : f32 to vector<16x128xf32>
    %75 = arith.mulf %73, %74 : vector<16x128xf32>
    %76 = arith.mulf %75, %75 : vector<16x128xf32>
    %cst_21 = arith.constant 0.000000e+00 : f32
    %77 = vector.broadcast %cst_21 : f32 to vector<16x128xf32>
    %78 = arith.subf %77, %76 : vector<16x128xf32>
    %79 = math.exp %78 : vector<16x128xf32>
    %80 = vector.extract_strided_slice %79 {offsets = [0, 0], sizes = [8, 128], strides = [1, 1]} : vector<16x128xf32> to vector<8x128xf32>
    %81 = vector.extract_strided_slice %79 {offsets = [8, 0], sizes = [8, 128], strides = [1, 1]} : vector<16x128xf32> to vector<8x128xf32>
    %82 = arith.subf %80, %81 : vector<8x128xf32>
    %c0_22 = arith.constant 0 : index
    %c0_23 = arith.constant 0 : index
    %83 = vector.load %arg4[%c0_22, %c0_23] : memref<272x128xf32, #tpu.memory_space<vmem>>, vector<128x8xf32>
    %cst_24 = arith.constant dense<0.000000e+00> : vector<8x8xf32>
    %84 = tpu.matmul %82, %83, %cst_24 {dimension_numbers = #tpu.dot_dimension_numbers<[1], [0], [0], [1], [0, 0, 1, 1], [], []>} : vector<8x128xf32>, vector<128x8xf32>, vector<8x8xf32> -> vector<8x8xf32>
    %c0_25 = arith.constant 0 : index
    %c0_26 = arith.constant 0 : index
    %85 = vector.load %arg3[%c0_25, %c0_26] : memref<32x256xf32, #tpu.memory_space<vmem>>, vector<32x256xf32>
    %cst_27 = arith.constant dense<0.000000e+00> : vector<8x256xf32>
    %86 = tpu.matmul %0, %85, %cst_27 {dimension_numbers = #tpu.dot_dimension_numbers<[1], [0], [0], [1], [0, 0, 1, 1], [], []>} : vector<8x32xf32>, vector<32x256xf32>, vector<8x256xf32> -> vector<8x256xf32>
    %c5 = arith.constant 5 : index
    %c0_28 = arith.constant 0 : index
    %87 = vector.load %arg5[%c5, %c0_28] : memref<16x256xf32, #tpu.memory_space<vmem>>, vector<1x256xf32>
    %88 = vector.broadcast %87 : vector<1x256xf32> to vector<8x256xf32>
    %89 = arith.addf %86, %88 : vector<8x256xf32>
    %c6 = arith.constant 6 : index
    %c0_29 = arith.constant 0 : index
    %90 = vector.load %arg5[%c6, %c0_29] : memref<16x256xf32, #tpu.memory_space<vmem>>, vector<1x256xf32>
    %91 = vector.broadcast %90 : vector<1x256xf32> to vector<8x256xf32>
    %92 = arith.mulf %89, %91 : vector<8x256xf32>
    %c7 = arith.constant 7 : index
    %c0_30 = arith.constant 0 : index
    %93 = vector.load %arg5[%c7, %c0_30] : memref<16x256xf32, #tpu.memory_space<vmem>>, vector<1x256xf32>
    %94 = vector.broadcast %93 : vector<1x256xf32> to vector<8x256xf32>
    %95 = arith.addf %92, %94 : vector<8x256xf32>
    %cst_31 = arith.constant 0.000000e+00 : f32
    %96 = vector.broadcast %cst_31 : f32 to vector<8x256xf32>
    %97 = arith.subf %96, %95 : vector<8x256xf32>
    %98 = math.exp %97 : vector<8x256xf32>
    %cst_32 = arith.constant 1.000000e+00 : f32
    %99 = vector.broadcast %cst_32 : f32 to vector<8x256xf32>
    %100 = arith.addf %99, %98 : vector<8x256xf32>
    %101 = tpu.reciprocal %100 {approx = true} : vector<8x256xf32> -> vector<8x256xf32>
    %102 = arith.mulf %95, %101 : vector<8x256xf32>
    %103 = vector.extract_strided_slice %102 {offsets = [0, 0], sizes = [8, 64], strides = [1, 1]} : vector<8x256xf32> to vector<8x64xf32>
    %104 = vector.extract_strided_slice %102 {offsets = [0, 64], sizes = [8, 16], strides = [1, 1]} : vector<8x256xf32> to vector<8x16xf32>
    %105 = vector.extract_strided_slice %102 {offsets = [0, 80], sizes = [8, 16], strides = [1, 1]} : vector<8x256xf32> to vector<8x16xf32>
    %106 = vector.extract_strided_slice %102 {offsets = [0, 128], sizes = [8, 64], strides = [1, 1]} : vector<8x256xf32> to vector<8x64xf32>
    %107 = vector.extract_strided_slice %89 {offsets = [0, 192], sizes = [8, 8], strides = [1, 1]} : vector<8x256xf32> to vector<8x8xf32>
    %108 = arith.addf %107, %84 : vector<8x8xf32>
    %c8 = arith.constant 8 : index
    %c0_33 = arith.constant 0 : index
    %109 = vector.load %arg5[%c8, %c0_33] : memref<16x256xf32, #tpu.memory_space<vmem>>, vector<1x8xf32>
    %110 = vector.broadcast %109 : vector<1x8xf32> to vector<8x8xf32>
    %111 = arith.addf %108, %110 : vector<8x8xf32>
    %cst_34 = arith.constant 0.000000e+00 : f32
    %112 = vector.broadcast %cst_34 : f32 to vector<8x8xf32>
    %113 = arith.maximumf %111, %112 : vector<8x8xf32>
    %114 = math.absf %111 : vector<8x8xf32>
    %cst_35 = arith.constant 0.000000e+00 : f32
    %115 = vector.broadcast %cst_35 : f32 to vector<8x8xf32>
    %116 = arith.subf %115, %114 : vector<8x8xf32>
    %117 = math.exp %116 : vector<8x8xf32>
    %118 = math.log1p %117 : vector<8x8xf32>
    %119 = arith.addf %113, %118 : vector<8x8xf32>
    %c192 = arith.constant 192 : index
    %c0_36 = arith.constant 0 : index
    %120 = vector.load %arg4[%c192, %c0_36] : memref<272x128xf32, #tpu.memory_space<vmem>>, vector<8x64xf32>
    %cst_37 = arith.constant dense<0.000000e+00> : vector<8x64xf32>
    %121 = tpu.matmul %119, %120, %cst_37 {dimension_numbers = #tpu.dot_dimension_numbers<[1], [0], [0], [1], [0, 0, 1, 1], [], []>} : vector<8x8xf32>, vector<8x64xf32>, vector<8x64xf32> -> vector<8x64xf32>
    %122 = arith.mulf %105, %104 : vector<8x16xf32>
    %cst_38 = arith.constant dense<0.000000e+00> : vector<8xf32>
    %123 = vector.multi_reduction <add>, %122, %cst_38 [1] : vector<8x16xf32> to vector<8xf32>
    %124 = vector.shape_cast %123 : vector<8xf32> to vector<8x1xf32>
    %125 = vector.broadcast %124 : vector<8x1xf32> to vector<8x64xf32>
    %126 = arith.mulf %121, %125 : vector<8x64xf32>
    %c9 = arith.constant 9 : index
    %c0_39 = arith.constant 0 : index
    %127 = vector.load %arg5[%c9, %c0_39] : memref<16x256xf32, #tpu.memory_space<vmem>>, vector<1x64xf32>
    %128 = vector.broadcast %127 : vector<1x64xf32> to vector<8x64xf32>
    %129 = arith.addf %126, %128 : vector<8x64xf32>
    %130 = arith.mulf %103, %129 : vector<8x64xf32>
    %131 = arith.mulf %130, %106 : vector<8x64xf32>
    %132 = arith.mulf %131, %131 : vector<8x64xf32>
    %cst_40 = arith.constant dense<0.000000e+00> : vector<8xf32>
    %133 = vector.multi_reduction <add>, %132, %cst_40 [1] : vector<8x64xf32> to vector<8xf32>
    %134 = vector.shape_cast %133 : vector<8xf32> to vector<8x1xf32>
    %cst_41 = arith.constant 6.400000e+01 : f32
    %135 = vector.broadcast %cst_41 : f32 to vector<8x1xf32>
    %136 = arith.divf %134, %135 : vector<8x1xf32>
    %cst_42 = arith.constant 9.99999997E-7 : f32
    %137 = vector.broadcast %cst_42 : f32 to vector<8x1xf32>
    %138 = arith.addf %136, %137 : vector<8x1xf32>
    %139 = math.rsqrt %138 : vector<8x1xf32>
    %140 = vector.broadcast %139 : vector<8x1xf32> to vector<8x64xf32>
    %141 = arith.mulf %131, %140 : vector<8x64xf32>
    %c10 = arith.constant 10 : index
    %c0_43 = arith.constant 0 : index
    %142 = vector.load %arg5[%c10, %c0_43] : memref<16x256xf32, #tpu.memory_space<vmem>>, vector<1x64xf32>
    %143 = vector.broadcast %142 : vector<1x64xf32> to vector<8x64xf32>
    %144 = arith.mulf %141, %143 : vector<8x64xf32>
    %c128 = arith.constant 128 : index
    %c0_44 = arith.constant 0 : index
    %145 = vector.load %arg4[%c128, %c0_44] : memref<272x128xf32, #tpu.memory_space<vmem>>, vector<64x32xf32>
    %cst_45 = arith.constant dense<0.000000e+00> : vector<8x32xf32>
    %146 = tpu.matmul %144, %145, %cst_45 {dimension_numbers = #tpu.dot_dimension_numbers<[1], [0], [0], [1], [0, 0, 1, 1], [], []>} : vector<8x64xf32>, vector<64x32xf32>, vector<8x32xf32> -> vector<8x32xf32>
    %c0_46 = arith.constant 0 : index
    %c0_47 = arith.constant 0 : index
    %147 = vector.load %arg6[%c0_46, %c0_47] : memref<8x32xf32, #tpu.memory_space<vmem>>, vector<8x32xf32>
    tpu.vector_store %arg6[%c0_46, %c0_47], %146 {strides = array<i32>} : memref<8x32xf32, #tpu.memory_space<vmem>>, vector<8x32xf32>,
    %148 = vector.extract_strided_slice %20 {offsets = [0, 0], sizes = [8, 4], strides = [1, 1]} : vector<16x4xf32> to vector<8x4xf32>
    %c0_48 = arith.constant 0 : index
    %c0_49 = arith.constant 0 : index
    %149 = vector.load %arg7[%c0_48, %c0_49] : memref<8x4xf32, #tpu.memory_space<vmem>>, vector<8x4xf32>
    tpu.vector_store %arg7[%c0_48, %c0_49], %148 {strides = array<i32>} : memref<8x4xf32, #tpu.memory_space<vmem>>, vector<8x4xf32>,
    %150 = vector.extract_strided_slice %49 {offsets = [0, 0], sizes = [8, 4], strides = [1, 1]} : vector<16x4xf32> to vector<8x4xf32>
    %c0_50 = arith.constant 0 : index
    %c0_51 = arith.constant 0 : index
    %151 = vector.load %arg8[%c0_50, %c0_51] : memref<8x4xf32, #tpu.memory_space<vmem>>, vector<8x4xf32>
    tpu.vector_store %arg8[%c0_50, %c0_51], %150 {strides = array<i32>} : memref<8x4xf32, #tpu.memory_space<vmem>>, vector<8x4xf32>,
    return
  }
}

</mosaic_0001>

<llo_original>
// kernel: continuous_mamba_block.1
$region0: #{continuous_mamba_block.1}
  #allocation0 [shape = 'u32[]', space=smem, size = 0x4, offset = 0x4, fixed_abs, tag = 'smem constant byte address 0x4 - core index']
  #allocation1 [shape = 'u32[144,128]{1,0:T(1,128)}', space=vmem, size = 0x12000, scoped, tag = 'internal scratch']
  %s0 = inlined_call_operand.vmem [shape: f32[8,32], index: 0, kind: input, shape index: {}]
  %s1 = inlined_call_operand.vmem [shape: f32[8,1], index: 1, kind: input, shape index: {}]
  %s2 = inlined_call_operand.vmem [shape: f32[8,1], index: 2, kind: input, shape index: {}]
  %s3 = inlined_call_operand.hbm [shape: f32[32,256], index: 3, kind: input, shape index: {}]
  %s4 = inlined_call_operand.hbm [shape: f32[272,128], index: 4, kind: input, shape index: {}]
  %s5 = inlined_call_operand.vmem [shape: f32[16,256], index: 5, kind: input, shape index: {}]
  %s6 = inlined_call_operand.vmem [shape: f32[8,32], index: 6, kind: output, shape index: {0}]
  %s7 = inlined_call_operand.vmem [shape: f32[8,4], index: 7, kind: output, shape index: {1}]
  %s8 = inlined_call_operand.vmem [shape: f32[8,4], index: 8, kind: output, shape index: {2}]
  %9 = xla_tuple %s6, %s7, %s8
  %s10 = sld [smem:[#allocation0]]
  $region58: #{continuous_mamba_block.1} parent=0
    _
  %s12 = ssub.s32 1, %s10
  %s13 = scalar_select 0, %s12, %s10
  $region1: #{continuous_mamba_block.1} parent=0
    #allocation2 [shape = 'u8[32768]{0}', space=vmem, size = 0x8000, scoped, tag = 'input window, operand 3, single buffered']
    #allocation3 [shape = 's32[1]{0}', space=sflag, size = 0x4, scoped, tag = 'scoped memory for continuous_mamba_block.1']
    #allocation4 [shape = 'u8[139264]{0}', space=vmem, size = 0x22000, scoped, tag = 'input window, operand 4, single buffered']
    #allocation5 [shape = 's32[1]{0}', space=sflag, size = 0x4, scoped, tag = 'scoped memory for continuous_mamba_block.1']
    %14 = vsyncpa [#allocation3], 0
    %15 = vsyncpa [#allocation5], 0
    // Predicated region
    $region2: #{continuous_mamba_block.1} parent=1 // pred_check
      _
    $region3: #{continuous_mamba_block.1} parent=1 // pred_check_branch
      %17 = sbr.rel (0) target = $region5
    $region4: #{continuous_mamba_block.1} parent=1 // pred_region
      _
    $region5: #{continuous_mamba_block.1} parent=1 // pred_fallthru
      _
    // Predicated region
    $region6: #{continuous_mamba_block.1} parent=1 // pred_check
      _
    $region7: #{continuous_mamba_block.1} parent=1 // pred_check_branch
      %19 = sbr.rel (0) target = $region9
    $region8: #{continuous_mamba_block.1} parent=1 // pred_region
      _
    $region9: #{continuous_mamba_block.1} parent=1 // pred_fallthru
      _
    // Predicated region
    $region10: #{continuous_mamba_block.1} parent=1 // pred_check
      _
    $region11: #{continuous_mamba_block.1} parent=1 // pred_check_branch
      %21 = sbr.rel (0) target = $region13
    $region12: #{continuous_mamba_block.1} parent=1 // pred_region
      _
    $region13: #{continuous_mamba_block.1} parent=1 // pred_fallthru
      _
    // Predicated region
    $region14: #{continuous_mamba_block.1} parent=1 // pred_check
      _
    $region15: #{continuous_mamba_block.1} parent=1 // pred_check_branch
      %23 = sbr.rel (0) target = $region17
    $region16: #{continuous_mamba_block.1} parent=1 // pred_region
      %s25 = ssub.s32 1024, 1024
      %26 = vsyncadd [#allocation3], %s25
      %s27 = sshll.u32 [#allocation2], 4
      %s28 = int_to_ptr.vmem [resolvable:$true] %s27
      %33 = dma.hbm_to_vmem [thread:$0]  %s3, 1024, %s28, [#allocation3], 256, 256, 16
    $region17: #{continuous_mamba_block.1} parent=1 // pred_fallthru
      _
    // Predicated region
    $region18: #{continuous_mamba_block.1} parent=1 // pred_check
      _
    $region19: #{continuous_mamba_block.1} parent=1 // pred_check_branch
      %35 = sbr.rel (0) target = $region21
    $region20: #{continuous_mamba_block.1} parent=1 // pred_region
      %s37 = ssub.s32 4352, 4352
      %38 = vsyncadd [#allocation5], %s37
      %s39 = sshll.u32 [#allocation4], 4
      %s40 = int_to_ptr.vmem [resolvable:$true] %s39
      %45 = dma.hbm_to_vmem [thread:$0]  %s4, 4352, %s40, [#allocation5], 128, 128, 8
    $region21: #{continuous_mamba_block.1} parent=1 // pred_fallthru
      _
    // Predicated region
    $region22: #{continuous_mamba_block.1} parent=1 // pred_check
      _
    $region23: #{continuous_mamba_block.1} parent=1 // pred_check_branch
      %47 = sbr.rel (0) target = $region25
    $region24: #{continuous_mamba_block.1} parent=1 // pred_region
      _
    $region25: #{continuous_mamba_block.1} parent=1 // pred_fallthru
      _
    // Predicated region
    $region26: #{continuous_mamba_block.1} parent=1 // pred_check
      _
    $region27: #{continuous_mamba_block.1} parent=1 // pred_check_branch
      %49 = sbr.rel (0) target = $region29
    $region28: #{continuous_mamba_block.1} parent=1 // pred_region
      %50 = dma.done [#allocation3], 1024
    $region29: #{continuous_mamba_block.1} parent=1 // pred_fallthru
      _
    // Predicated region
    $region30: #{continuous_mamba_block.1} parent=1 // pred_check
      _
    $region31: #{continuous_mamba_block.1} parent=1 // pred_check_branch
      %52 = sbr.rel (0) target = $region33
    $region32: #{continuous_mamba_block.1} parent=1 // pred_region
      %53 = dma.done [#allocation5], 4352
    $region33: #{continuous_mamba_block.1} parent=1 // pred_fallthru
      _
    %v54 = vld [vmem:[%s0] sm:$0xff]
    %v55 = vld [vmem:[%s1] sm:$0xff]
    %v56 = vld [vmem:[%s2] sm:$0xff]
    %v57 = vld [vmem:[%s5] ss:$0 sm:$0xff]
    %59 = vset.pattern.permute.xlu0 0
    %60 = vperm.xlu0 %59, %v55
    %v61 = vpop.permute.xlu0 %60
    %64 = vset.pattern.permute.xlu0 0
    %65 = vperm.xlu0 %64, %v56
    %v66 = vpop.permute.xlu0 %65
    %v68 = vmul.f32 %v61, %v57
    %v69 = vmul.f32 %v66, %v57
    %v70 = vld [vmem:[%s5 + $0x1] ss:$0 sm:$0xff]
    %v71 = vadd.f32 %v68, %v70
    %v72 = vadd.f32 %v69, %v70
    %vm73 = vcmask 31744
    %v74 = vsel %vm73, %v71, -inf
    %75 = vmax.xlane.f32.xlu0 %v74
    %v76 = vpop.xlane.xlu0 %75
    %v77 = vsel %vm73, %v72, -inf
    %78 = vmax.xlane.f32.xlu0 %v77
    %v79 = vpop.xlane.xlu0 %78
    %v80 = vsub.f32 %v71, %v76
    %v81 = vsub.f32 %v72, %v79
    %v82 = vmul.f32 %v80, 1.442695
    %v83 = vpow.pop %v82
    %v84 = vmul.f32 %v81, 1.442695
    %v85 = vpow.pop %v84
    %v86 = vsel %vm73, %v83, 0.0
    %87 = vadd.xlane.f32.xlu0 %v86
    %v88 = vpop.xlane.xlu0 %87
    %v89 = vsel %vm73, %v85, 0.0
    %90 = vadd.xlane.f32.xlu0 %v89
    %v91 = vpop.xlane.xlu0 %90
    %v92 = vrcp.pop %v88
    %v93 = vrcp.pop %v91
    %v94 = vmul.f32 %v83, %v92
    %v95 = vmul.f32 %v85, %v93
    %97 = vset.pattern.permute.xlu0 0
    %98 = vperm.xlu0 %97, %v94
    %v99 = vpop.permute.xlu0 %98
    %102 = vset.pattern.permute.xlu0 0
    %103 = vperm.xlu0 %102, %v95
    %v104 = vpop.permute.xlu0 %103
    %vm106 = vcmp.gt.f32.partialorder %v99, %v94
    %vm107 = vcmp.gt.f32.partialorder %v104, %v95
    %v108 = vsel %vm106, 1, 0
    %v109 = vsel %vm107, 1, 0
    %v110 = vcvt.s32.f32 %v108
    %v111 = vcvt.s32.f32 %v109
    %v112 = vadd.f32 %v110, 0.0
    %v113 = vadd.f32 %v111, 0.0
    %114 = vset.pattern.permute.xlu0 1
    %115 = vperm.xlu0 %114, %v94
    %v116 = vpop.permute.xlu0 %115
    %118 = vset.pattern.permute.xlu0 1
    %119 = vperm.xlu0 %118, %v95
    %v120 = vpop.permute.xlu0 %119
    %vm122 = vcmp.gt.f32.partialorder %v116, %v94
    %vm123 = vcmp.gt.f32.partialorder %v120, %v95
    %v124 = vsel %vm122, 1, 0
    %v125 = vsel %vm123, 1, 0
    %v126 = vcvt.s32.f32 %v124
    %v127 = vcvt.s32.f32 %v125
    %v128 = vadd.f32 %v112, %v126
    %v129 = vadd.f32 %v113, %v127
    %130 = vset.pattern.permute.xlu0 2
    %131 = vperm.xlu0 %130, %v94
    %v132 = vpop.permute.xlu0 %131
    %134 = vset.pattern.permute.xlu0 2
    %135 = vperm.xlu0 %134, %v95
    %v136 = vpop.permute.xlu0 %135
    %vm138 = vcmp.gt.f32.partialorder %v132, %v94
    %vm139 = vcmp.gt.f32.partialorder %v136, %v95
    %v140 = vsel %vm138, 1, 0
    %v141 = vsel %vm139, 1, 0
    %v142 = vcvt.s32.f32 %v140
    %v143 = vcvt.s32.f32 %v141
    %v144 = vadd.f32 %v128, %v142
    %v145 = vadd.f32 %v129, %v143
    %146 = vset.pattern.permute.xlu0 3
    %147 = vperm.xlu0 %146, %v94
    %v148 = vpop.permute.xlu0 %147
    %150 = vset.pattern.permute.xlu0 3
    %151 = vperm.xlu0 %150, %v95
    %v152 = vpop.permute.xlu0 %151
    %vm154 = vcmp.gt.f32.partialorder %v148, %v94
    %vm155 = vcmp.gt.f32.partialorder %v152, %v95
    %v156 = vsel %vm154, 1, 0
    %v157 = vsel %vm155, 1, 0
    %v158 = vcvt.s32.f32 %v156
    %v159 = vcvt.s32.f32 %v157
    %v160 = vadd.f32 %v144, %v158
    %v161 = vadd.f32 %v145, %v159
    %vm162 = vcmp.lt.f32.partialorder %v160, 2.0
    %vm163 = vcmp.lt.f32.partialorder %v161, 2.0
    %v164 = vsel %vm162, 1, 0
    %v165 = vsel %vm163, 1, 0
    %v166 = vcvt.s32.f32 %v164
    %v167 = vcvt.s32.f32 %v165
    %v168 = vmul.f32 %v94, %v166
    %v169 = vmul.f32 %v95, %v167
    %v170 = vsel %vm73, %v168, 0.0
    %171 = vadd.xlane.f32.xlu0 %v170
    %v172 = vpop.xlane.xlu0 %171
    %v173 = vsel %vm73, %v169, 0.0
    %174 = vadd.xlane.f32.xlu0 %v173
    %v175 = vpop.xlane.xlu0 %174
    %v176 = vadd.f32 %v172, 1e-09
    %v177 = vadd.f32 %v175, 1e-09
    %v178 = vrcp.pop %v176
    %v179 = vrcp.pop %v177
    %v180 = vmul.f32 %v168, %v178
    %v181 = vmul.f32 %v169, %v179
    %v182 = vld [vmem:[%s5 + $0x2] ss:$0 sm:$0xff]
    %v183 = vmul.f32 %v61, %v182
    %v184 = vmul.f32 %v66, %v182
    %v185 = vld [vmem:[%s5 + $0x3] ss:$0 sm:$0xff]
    %v186 = vadd.f32 %v183, %v185
    %v187 = vadd.f32 %v184, %v185
    %v188 = vand.u32 2147483647, %v186
    %vm189 = vcmp.le.f32.partialorder %v188, 0.7853982
    %vm190 = vcmp.lt.s32.totalorder %v186, 0
    %v191 = vand.u32 %v186, 2139095040
    %v192 = vshrl.u32 %v191, 23
    %v193 = vsub.s32 %v192, 127
    %v194 = vand.u32 2147483647, %v186
    %v195 = vand.u32 %v194, 8388607
    %v196 = vor.u32 %v195, 8388608
    %v197 = vsub.s32 0, %v196
    %v198 = vadd.s32 %v193, 1
    %vm199 = vcmp.gt.s32.totalorder %v198, 0
    %v200 = vsel %vm199, %v198, 0
    %v201 = vshrl.u32 %v200, 5
    %v202 = vand.u32 %v200, 31
    %v203 = vsub.s32 32, %v202
    %v204 = vshrl.u32 683565275, %v203
    %v205 = vshll.u32 683565275, %v202
    %v206 = vshrl.u32 2475754826, %v203
    %v207 = vor.u32 %v205, %v206
    %v208 = vshll.u32 2475754826, %v202
    %v209 = vshrl.u32 2131351028, %v203
    %v210 = vor.u32 %v208, %v209
    %v211 = vshll.u32 2131351028, %v202
    %v212 = vshrl.u32 2102212464, %v203
    %v213 = vor.u32 %v211, %v212
    %v214 = vshll.u32 2102212464, %v202
    %v215 = vshrl.u32 920167782, %v203
    %v216 = vor.u32 %v214, %v215
    %v217 = vshll.u32 920167782, %v202
    %v218 = vshrl.u32 1326507024, %v203
    %v219 = vor.u32 %v217, %v218
    %vm220 = vcmp.lt.s32.totalorder %v201, 1
    %vm221 = vcmp.lt.s32.totalorder %v201, 2
    %vm222 = vcmp.lt.s32.totalorder %v201, 3
    %vm223 = vcmp.lt.s32.totalorder %v201, 4
    %v224 = vsel %vm220, %v204, %v207
    %v225 = vsel %vm223, %v213, 2102212464
    %v226 = vsel %vm222, %v210, %v225
    %v227 = vsel %vm221, %v224, %v226
    %v228 = vsel %vm220, %v207, %v210
    %v229 = vsel %vm223, %v216, 920167782
    %v230 = vsel %vm222, %v213, %v229
    %v231 = vsel %vm221, %v228, %v230
    %v232 = vsel %vm220, %v210, %v213
    %v233 = vsel %vm223, %v219, 1326507024
    %v234 = vsel %vm222, %v216, %v233
    %v235 = vsel %vm221, %v232, %v234
    %v236 = vshll.u32 %v196, 8
    %v237 = vmul.u32.u64.compose %v236, %v235
    %v238 = vextract.low.u32 %v237
    %v239 = vextract.high.u32 %v237
    %v240 = vmul.u32.u64.compose %v236, %v231
    %v241 = vextract.low.u32 %v240
    %v242 = vextract.high.u32 %v240
    %v243 = vmul.u32 %v236, %v227
    %v244 = vadd.s32 %v239, %v241
    %vm245 = vc.u32 %v239, %v241
    %v246 = vadd.s32 %v242, 1
    %v247 = vsel %vm245, %v246, %v242
    %v248 = vadd.s32 %v243, %v247
    %v249 = vadd.s32 %v248, 536870912
    %v250 = vshrl.u32 %v249, 30
    %v251 = vshll.u32 %v250, 30
    %v252 = vsub.s32 %v248, %v251
    %vm253 = vcmp.lt.s32.totalorder %v252, 0
    %v254 = vsub.s32 0, %v252
    %v255 = vsel %vm253, %v254, %v252
    %v256 = vclz %v255
    %v257 = vsub.s32 %v256, 2
    %vm258 = vcmp.gt.s32.totalorder 0, %v257
    %v259 = vsel %vm258, 0, %v257
    %v260 = vsub.s32 32, %v259
    %v261 = vshll.u32 %v252, %v259
    %v262 = vshrl.u32 %v244, %v260
    %v263 = vor.u32 %v261, %v262
    %v264 = vsub.s32 4294967266, %v259
    %v265 = vadd.s32 %v264, 127
    %v266 = vshll.u32 %v265, 23
    %v267 = vor.u32 4788187, %v266
    %v268 = vand.u32 2147483647, %v267
    %v270 = vcvt.s32.f32 %v263
    %v271 = vmul.f32 %v270, %v268
    %v272 = vxor.u32 %v271, 2147483648
    %v273 = vsel %vm190, %v272, %v271
    %v274 = vsub.s32 4, %v250
    %v275 = vsel %vm190, %v274, %v250
    %v276 = vsel %vm189, %v186, %v273
    %v277 = vsel %vm189, 0, %v275
    %v278 = vcosq.f32.pop %v276
    %v279 = vsinq.f32.pop %v276
    %vm280 = vweird.f32 %v186
    %v281 = vadd.s32 %v277, 3
    %v282 = vand.u32 %v281, 3
    %vm283 = vcmp.lt.s32.totalorder %v282, 2
    %vm284 = vcmp.eq.s32.totalorder %v282, 0
    %v285 = vxor.u32 %v279, 2147483648
    %v286 = vsel %vm284, %v278, %v285
    %vm287 = vcmp.eq.s32.totalorder %v282, 2
    %v288 = vxor.u32 %v278, 2147483648
    %v289 = vsel %vm287, %v288, %v279
    %v290 = vsel %vm283, %v286, %v289
    %v291 = vsel %vm280, nan, %v290
    %v292 = vand.u32 2147483647, %v187
    %vm293 = vcmp.le.f32.partialorder %v292, 0.7853982
    %vm294 = vcmp.lt.s32.totalorder %v187, 0
    %v295 = vand.u32 %v187, 2139095040
    %v296 = vshrl.u32 %v295, 23
    %v297 = vsub.s32 %v296, 127
    %v298 = vand.u32 2147483647, %v187
    %v299 = vand.u32 %v298, 8388607
    %v300 = vor.u32 %v299, 8388608
    %v301 = vsub.s32 0, %v300
    %v302 = vadd.s32 %v297, 1
    %vm303 = vcmp.gt.s32.totalorder %v302, 0
    %v304 = vsel %vm303, %v302, 0
    %v305 = vshrl.u32 %v304, 5
    %v306 = vand.u32 %v304, 31
    %v307 = vsub.s32 32, %v306
    %v308 = vshrl.u32 683565275, %v307
    %v309 = vshll.u32 683565275, %v306
    %v310 = vshrl.u32 2475754826, %v307
    %v311 = vor.u32 %v309, %v310
    %v312 = vshll.u32 2475754826, %v306
    %v313 = vshrl.u32 2131351028, %v307
    %v314 = vor.u32 %v312, %v313
    %v315 = vshll.u32 2131351028, %v306
    %v316 = vshrl.u32 2102212464, %v307
    %v317 = vor.u32 %v315, %v316
    %v318 = vshll.u32 2102212464, %v306
    %v319 = vshrl.u32 920167782, %v307
    %v320 = vor.u32 %v318, %v319
    %v321 = vshll.u32 920167782, %v306
    %v322 = vshrl.u32 1326507024, %v307
    %v323 = vor.u32 %v321, %v322
    %vm324 = vcmp.lt.s32.totalorder %v305, 1
    %vm325 = vcmp.lt.s32.totalorder %v305, 2
    %vm326 = vcmp.lt.s32.totalorder %v305, 3
    %vm327 = vcmp.lt.s32.totalorder %v305, 4
    %v328 = vsel %vm324, %v308, %v311
    %v329 = vsel %vm327, %v317, 2102212464
    %v330 = vsel %vm326, %v314, %v329
    %v331 = vsel %vm325, %v328, %v330
    %v332 = vsel %vm324, %v311, %v314
    %v333 = vsel %vm327, %v320, 920167782
    %v334 = vsel %vm326, %v317, %v333
    %v335 = vsel %vm325, %v332, %v334
    %v336 = vsel %vm324, %v314, %v317
    %v337 = vsel %vm327, %v323, 1326507024
    %v338 = vsel %vm326, %v320, %v337
    %v339 = vsel %vm325, %v336, %v338
    %v340 = vshll.u32 %v300, 8
    %v341 = vmul.u32.u64.compose %v340, %v339
    %v342 = vextract.low.u32 %v341
    %v343 = vextract.high.u32 %v341
    %v344 = vmul.u32.u64.compose %v340, %v335
    %v345 = vextract.low.u32 %v344
    %v346 = vextract.high.u32 %v344
    %v347 = vmul.u32 %v340, %v331
    %v348 = vadd.s32 %v343, %v345
    %vm349 = vc.u32 %v343, %v345
    %v350 = vadd.s32 %v346, 1
    %v351 = vsel %vm349, %v350, %v346
    %v352 = vadd.s32 %v347, %v351
    %v353 = vadd.s32 %v352, 536870912
    %v354 = vshrl.u32 %v353, 30
    %v355 = vshll.u32 %v354, 30
    %v356 = vsub.s32 %v352, %v355
    %vm357 = vcmp.lt.s32.totalorder %v356, 0
    %v358 = vsub.s32 0, %v356
    %v359 = vsel %vm357, %v358, %v356
    %v360 = vclz %v359
    %v361 = vsub.s32 %v360, 2
    %vm362 = vcmp.gt.s32.totalorder 0, %v361
    %v363 = vsel %vm362, 0, %v361
    %v364 = vsub.s32 32, %v363
    %v365 = vshll.u32 %v356, %v363
    %v366 = vshrl.u32 %v348, %v364
    %v367 = vor.u32 %v365, %v366
    %v368 = vsub.s32 4294967266, %v363
    %v369 = vadd.s32 %v368, 127
    %v370 = vshll.u32 %v369, 23
    %v371 = vor.u32 4788187, %v370
    %v372 = vand.u32 2147483647, %v371
    %v374 = vcvt.s32.f32 %v367
    %v375 = vmul.f32 %v374, %v372
    %v376 = vxor.u32 %v375, 2147483648
    %v377 = vsel %vm294, %v376, %v375
    %v378 = vsub.s32 4, %v354
    %v379 = vsel %vm294, %v378, %v354
    %v380 = vsel %vm293, %v187, %v377
    %v381 = vsel %vm293, 0, %v379
    %v382 = vcosq.f32.pop %v380
    %v383 = vsinq.f32.pop %v380
    %vm384 = vweird.f32 %v187
    %v385 = vadd.s32 %v381, 3
    %v386 = vand.u32 %v385, 3
    %vm387 = vcmp.lt.s32.totalorder %v386, 2
    %vm388 = vcmp.eq.s32.totalorder %v386, 0
    %v389 = vxor.u32 %v383, 2147483648
    %v390 = vsel %vm388, %v382, %v389
    %vm391 = vcmp.eq.s32.totalorder %v386, 2
    %v392 = vxor.u32 %v382, 2147483648
    %v393 = vsel %vm391, %v392, %v383
    %v394 = vsel %vm387, %v390, %v393
    %v395 = vsel %vm384, nan, %v394
    %v396 = vld [vmem:[#allocation4 + $0xc8] sm:$0xf]
    %v398 = vsel %vm73, %v180, 0
    %v401 = vsel %vm73, %v181, 0
    %vm403 = vcmask 1043456
    %v405 = vsel %vm403, %v396, 0
    %407 = vmatprep.subr.mxu0 0.0
    %408 = vmatpush1.msra.mxu0 %v405
    %409 = vmatprep.subr.mxu0 0.0
    %410 = vmatpush1.msra.mxu0 0.0
    %411 = vmatprep.subr.mxu0 0.0
    %412 = vmatpush1.msra.mxu0 0.0
    %413 = vmatprep.subr.mxu0 0.0
    %414 = vmatpush1.msra.mxu0 0.0
    %415 = vmatprep.subr.mxu0 0.0
    %416 = vmatpush1.msra.mxu0 0.0
    %417 = vmatprep.subr.mxu0 0.0
    %418 = vmatpush1.msra.mxu0 0.0
    %419 = vmatprep.subr.mxu0 0.0
    %420 = vmatpush1.msra.mxu0 0.0
    %421 = vmatprep.subr.mxu0 0.0
    %422 = vmatpush1.msra.mxu0 0.0
    %423 = vmatprep.subr.mxu0 0.0
    %424 = vmatpush1.msra.mxu0 0.0
    %425 = vmatprep.subr.mxu0 0.0
    %426 = vmatpush1.msra.mxu0 0.0
    %427 = vmatprep.subr.mxu0 0.0
    %428 = vmatpush1.msra.mxu0 0.0
    %429 = vmatprep.subr.mxu0 0.0
    %430 = vmatpush1.msra.mxu0 0.0
    %431 = vmatprep.subr.mxu0 0.0
    %432 = vmatpush1.msra.mxu0 0.0
    %433 = vmatprep.subr.mxu0 0.0
    %434 = vmatpush1.msra.mxu0 0.0
    %435 = vmatprep.subr.mxu0 0.0
    %436 = vmatpush1.msra.mxu0 0.0
    %437 = vmatprep.subr.mxu0 0.0
    %438 = vmatpush1.msra.mxu0 0.0
    %439 = vmatprep.subr.mxu0 0.0
    %440 = vmatpush1.msra.mxu0 0.0
    %441 = vmatprep.subr.mxu0 0.0
    %442 = vmatpush1.msra.mxu0 0.0
    %443 = vmatprep.subr.mxu0 0.0
    %444 = vmatpush1.msra.mxu0 0.0
    %445 = vmatprep.subr.mxu0 0.0
    %446 = vmatpush1.msra.mxu0 0.0
    %447 = vmatprep.subr.mxu0 0.0
    %448 = vmatpush1.msra.mxu0 0.0
    %449 = vmatprep.subr.mxu0 0.0
    %450 = vmatpush1.msra.mxu0 0.0
    %451 = vmatprep.subr.mxu0 0.0
    %452 = vmatpush1.msra.mxu0 0.0
    %453 = vmatprep.subr.mxu0 0.0
    %454 = vmatpush1.msra.mxu0 0.0
    %455 = vmatprep.subr.mxu0 0.0
    %456 = vmatpush1.msra.mxu0 0.0
    %457 = vmatprep.subr.mxu0 0.0
    %458 = vmatpush1.msra.mxu0 0.0
    %459 = vmatprep.subr.mxu0 0.0
    %460 = vmatpush1.msra.mxu0 0.0
    %461 = vmatprep.subr.mxu0 0.0
    %462 = vmatpush1.msra.mxu0 0.0
    %463 = vmatprep.subr.mxu0 0.0
    %464 = vmatpush1.msra.mxu0 0.0
    %465 = vmatprep.subr.mxu0 0.0
    %466 = vmatpush1.msra.mxu0 0.0
    %467 = vmatprep.subr.mxu0 0.0
    %468 = vmatpush1.msra.mxu0 0.0
    %469 = vmatprep.subr.mxu0 0.0
    %470 = vmatpush1.msra.mxu0 0.0
    %471 = vmatprep.mubr.f32.mxu0 0.0
    %472 = vmatmul.mubr.f32.gmra.mrb[0].mxu0 %v398
    %v473 = vpop.f32.mrb[0].mxu0
    %v474 = vadd.f32 0.0, %v473
    %v475 = vpop.f32.mrb[0].mxu0
    %476 = vmatprep.mubr.f32.mxu0 0.0
    %477 = vmatmul.mubr.f32.gmra.mrb[0].mxu0 %v401
    %v478 = vpop.f32.mrb[0].mxu0
    %v479 = vadd.f32 0.0, %v478
    %v480 = vpop.f32.mrb[0].mxu0
    %481 = vdwg.mxu0
    %v482 = vmul.f32 %v474, %v291
    %v483 = vmul.f32 %v479, %v395
    %v484 = vld [vmem:[#allocation4 + $0xd0] sm:$0xff]
    %v485 = vld [vmem:[#allocation4 + $0xd8] sm:$0xff]
    %v486 = vld [vmem:[#allocation4 + $0xe0] sm:$0xff]
    %v487 = vld [vmem:[#allocation4 + $0xe8] sm:$0xff]
    %v488 = vld [vmem:[#allocation4 + $0xf0] sm:$0xff]
    %v489 = vld [vmem:[#allocation4 + $0xf8] sm:$0xff]
    %v490 = vld [vmem:[#allocation4 + $0x100] sm:$0xff]
    %v491 = vld [vmem:[#allocation4 + $0x108] sm:$0xff]
    %vm492 = vcmask 523264
    %v494 = vsel %vm492, %v482, 0
    %v497 = vsel %vm492, %v483, 0
    %499 = vmatprep.subr.mxu0 0.0
    %500 = vmatpush1.msra.mxu0 %v484
    %501 = vmatprep.subr.mxu0 0.0
    %502 = vmatpush1.msra.mxu0 %v485
    %503 = vmatprep.subr.mxu0 0.0
    %504 = vmatpush1.msra.mxu0 %v486
    %505 = vmatprep.subr.mxu0 0.0
    %506 = vmatpush1.msra.mxu0 %v487
    %507 = vmatprep.subr.mxu0 0.0
    %508 = vmatpush1.msra.mxu0 %v488
    %509 = vmatprep.subr.mxu0 0.0
    %510 = vmatpush1.msra.mxu0 %v489
    %511 = vmatprep.subr.mxu0 0.0
    %512 = vmatpush1.msra.mxu0 %v490
    %513 = vmatprep.subr.mxu0 0.0
    %514 = vmatpush1.msra.mxu0 %v491
    %515 = vmatprep.subr.mxu0 0.0
    %516 = vmatpush1.msra.mxu0 0.0
    %517 = vmatprep.subr.mxu0 0.0
    %518 = vmatpush1.msra.mxu0 0.0
    %519 = vmatprep.subr.mxu0 0.0
    %520 = vmatpush1.msra.mxu0 0.0
    %521 = vmatprep.subr.mxu0 0.0
    %522 = vmatpush1.msra.mxu0 0.0
    %523 = vmatprep.subr.mxu0 0.0
    %524 = vmatpush1.msra.mxu0 0.0
    %525 = vmatprep.subr.mxu0 0.0
    %526 = vmatpush1.msra.mxu0 0.0
    %527 = vmatprep.subr.mxu0 0.0
    %528 = vmatpush1.msra.mxu0 0.0
    %529 = vmatprep.subr.mxu0 0.0
    %530 = vmatpush1.msra.mxu0 0.0
    %531 = vmatprep.subr.mxu0 0.0
    %532 = vmatpush1.msra.mxu0 0.0
    %533 = vmatprep.subr.mxu0 0.0
    %534 = vmatpush1.msra.mxu0 0.0
    %535 = vmatprep.subr.mxu0 0.0
    %536 = vmatpush1.msra.mxu0 0.0
    %537 = vmatprep.subr.mxu0 0.0
    %538 = vmatpush1.msra.mxu0 0.0
    %539 = vmatprep.subr.mxu0 0.0
    %540 = vmatpush1.msra.mxu0 0.0
    %541 = vmatprep.subr.mxu0 0.0
    %542 = vmatpush1.msra.mxu0 0.0
    %543 = vmatprep.subr.mxu0 0.0
    %544 = vmatpush1.msra.mxu0 0.0
    %545 = vmatprep.subr.mxu0 0.0
    %546 = vmatpush1.msra.mxu0 0.0
    %547 = vmatprep.subr.mxu0 0.0
    %548 = vmatpush1.msra.mxu0 0.0
    %549 = vmatprep.subr.mxu0 0.0
    %550 = vmatpush1.msra.mxu0 0.0
    %551 = vmatprep.subr.mxu0 0.0
    %552 = vmatpush1.msra.mxu0 0.0
    %553 = vmatprep.subr.mxu0 0.0
    %554 = vmatpush1.msra.mxu0 0.0
    %555 = vmatprep.subr.mxu0 0.0
    %556 = vmatpush1.msra.mxu0 0.0
    %557 = vmatprep.subr.mxu0 0.0
    %558 = vmatpush1.msra.mxu0 0.0
    %559 = vmatprep.subr.mxu0 0.0
    %560 = vmatpush1.msra.mxu0 0.0
    %561 = vmatprep.subr.mxu0 0.0
    %562 = vmatpush1.msra.mxu0 0.0
    %563 = vmatprep.mubr.f32.mxu0 0.0
    %564 = vmatmul.mubr.f32.gmra.mrb[0].mxu0 %v494
    %v565 = vpop.f32.mrb[0].mxu0
    %v566 = vadd.f32 0.0, %v565
    %v567 = vpop.f32.mrb[0].mxu0
    %568 = vmatprep.mubr.f32.mxu0 0.0
    %569 = vmatmul.mubr.f32.gmra.mrb[0].mxu0 %v497
    %v570 = vpop.f32.mrb[0].mxu0
    %v571 = vadd.f32 0.0, %v570
    %v572 = vpop.f32.mrb[0].mxu0
    %573 = vdwg.mxu0
    %v574 = vld [vmem:[%s5 + $0x4] ss:$0 sm:$0xff]
    %v575 = vsub.f32 %v566, %v574
    %v576 = vsub.f32 %v571, %v574
    %v577 = vmul.f32 %v575, 1.5
    %v578 = vmul.f32 %v576, 1.5
    %v579 = vmul.f32 %v577, %v577
    %v580 = vmul.f32 %v578, %v578
    %v581 = vsub.f32 0.0, %v579
    %v582 = vsub.f32 0.0, %v580
    %v583 = vmul.f32 %v581, 1.442695
    %v584 = vpow.pop %v583
    %v585 = vmul.f32 %v582, 1.442695
    %v586 = vpow.pop %v585
    %v587 = vsub.f32 %v584, %v586
    %v588 = vld [vmem:[#allocation4] sm:$0xff]
    %v589 = vld [vmem:[#allocation4 + $0x8] sm:$0xff]
    %v590 = vld [vmem:[#allocation4 + $0x10] sm:$0xff]
    %v591 = vld [vmem:[#allocation4 + $0x18] sm:$0xff]
    %v592 = vld [vmem:[#allocation4 + $0x20] sm:$0xff]
    %v593 = vld [vmem:[#allocation4 + $0x28] sm:$0xff]
    %v594 = vld [vmem:[#allocation4 + $0x30] sm:$0xff]
    %v595 = vld [vmem:[#allocation4 + $0x38] sm:$0xff]
    %v596 = vld [vmem:[#allocation4 + $0x40] sm:$0xff]
    %v597 = vld [vmem:[#allocation4 + $0x48] sm:$0xff]
    %v598 = vld [vmem:[#allocation4 + $0x50] sm:$0xff]
    %v599 = vld [vmem:[#allocation4 + $0x58] sm:$0xff]
    %v600 = vld [vmem:[#allocation4 + $0x60] sm:$0xff]
    %v601 = vld [vmem:[#allocation4 + $0x68] sm:$0xff]
    %v602 = vld [vmem:[#allocation4 + $0x70] sm:$0xff]
    %v603 = vld [vmem:[#allocation4 + $0x78] sm:$0xff]
    %604 = vmatprep.subr.mxu0 0.0
    %605 = vmatpush1.msra.mxu0 %v588
    %606 = vmatprep.subr.mxu0 0.0
    %607 = vmatpush1.msra.mxu0 %v589
    %608 = vmatprep.subr.mxu0 0.0
    %609 = vmatpush1.msra.mxu0 %v590
    %610 = vmatprep.subr.mxu0 0.0
    %611 = vmatpush1.msra.mxu0 %v591
    %612 = vmatprep.subr.mxu0 0.0
    %613 = vmatpush1.msra.mxu0 %v592
    %614 = vmatprep.subr.mxu0 0.0
    %615 = vmatpush1.msra.mxu0 %v593
    %616 = vmatprep.subr.mxu0 0.0
    %617 = vmatpush1.msra.mxu0 %v594
    %618 = vmatprep.subr.mxu0 0.0
    %619 = vmatpush1.msra.mxu0 %v595
    %620 = vmatprep.subr.mxu0 0.0
    %621 = vmatpush1.msra.mxu0 %v596
    %622 = vmatprep.subr.mxu0 0.0
    %623 = vmatpush1.msra.mxu0 %v597
    %624 = vmatprep.subr.mxu0 0.0
    %625 = vmatpush1.msra.mxu0 %v598
    %626 = vmatprep.subr.mxu0 0.0
    %627 = vmatpush1.msra.mxu0 %v599
    %628 = vmatprep.subr.mxu0 0.0
    %629 = vmatpush1.msra.mxu0 %v600
    %630 = vmatprep.subr.mxu0 0.0
    %631 = vmatpush1.msra.mxu0 %v601
    %632 = vmatprep.subr.mxu0 0.0
    %633 = vmatpush1.msra.mxu0 %v602
    %634 = vmatprep.subr.mxu0 0.0
    %635 = vmatpush1.msra.mxu0 %v603
    %636 = vmatprep.subr.mxu0 0.0
    %637 = vmatpush1.msra.mxu0 0.0
    %638 = vmatprep.subr.mxu0 0.0
    %639 = vmatpush1.msra.mxu0 0.0
    %640 = vmatprep.subr.mxu0 0.0
    %641 = vmatpush1.msra.mxu0 0.0
    %642 = vmatprep.subr.mxu0 0.0
    %643 = vmatpush1.msra.mxu0 0.0
    %644 = vmatprep.subr.mxu0 0.0
    %645 = vmatpush1.msra.mxu0 0.0
    %646 = vmatprep.subr.mxu0 0.0
    %647 = vmatpush1.msra.mxu0 0.0
    %648 = vmatprep.subr.mxu0 0.0
    %649 = vmatpush1.msra.mxu0 0.0
    %650 = vmatprep.subr.mxu0 0.0
    %651 = vmatpush1.msra.mxu0 0.0
    %652 = vmatprep.subr.mxu0 0.0
    %653 = vmatpush1.msra.mxu0 0.0
    %654 = vmatprep.subr.mxu0 0.0
    %655 = vmatpush1.msra.mxu0 0.0
    %656 = vmatprep.subr.mxu0 0.0
    %657 = vmatpush1.msra.mxu0 0.0
    %658 = vmatprep.subr.mxu0 0.0
    %659 = vmatpush1.msra.mxu0 0.0
    %660 = vmatprep.subr.mxu0 0.0
    %661 = vmatpush1.msra.mxu0 0.0
    %662 = vmatprep.subr.mxu0 0.0
    %663 = vmatpush1.msra.mxu0 0.0
    %664 = vmatprep.subr.mxu0 0.0
    %665 = vmatpush1.msra.mxu0 0.0
    %666 = vmatprep.subr.mxu0 0.0
    %667 = vmatpush1.msra.mxu0 0.0
    %668 = vmatprep.mubr.f32.mxu0 0.0
    %669 = vmatmul.mubr.f32.gmra.mrb[0].mxu0 %v587
    %v670 = vpop.f32.mrb[0].mxu0
    %v671 = vadd.f32 0.0, %v670
    %v672 = vpop.f32.mrb[0].mxu0
    %673 = vdwg.mxu0
    %v674 = vld [vmem:[#allocation2] sm:$0xff]
    %v675 = vld [vmem:[#allocation2 + $0x8] sm:$0xff]
    %v676 = vld [vmem:[#allocation2 + $0x10] sm:$0xff]
    %v677 = vld [vmem:[#allocation2 + $0x18] sm:$0xff]
    %v678 = vld [vmem:[#allocation2 + $0x20] sm:$0xff]
    %v679 = vld [vmem:[#allocation2 + $0x28] sm:$0xff]
    %v680 = vld [vmem:[#allocation2 + $0x30] sm:$0xff]
    %v681 = vld [vmem:[#allocation2 + $0x38] sm:$0xff]
    %s682 = scalar_lea.vmem %s5, 5
    %v683 = vld [vmem:[%s682] ss:$8 sm:$0x3]
    %v685 = vlaneseq
    %v686 = vshrl.u32 %v685, 7
    %v687 = vsub.s32 0, %v686
    %v688 = vrot.slane %v683, %v687
    %v689 = vlaneseq
    %v690 = vshrl.u32 %v689, 7
    %v691 = vsub.s32 1, %v690
    %v692 = vrot.slane %v683, %v691
    %vm695 = vcmask 261120
    %v697 = vsel %vm695, %v54, 0
    %699 = vmatprep.subr.mxu0 %v675
    %700 = vmatpush1.msra.mxu0 %v674
    %701 = vmatprep.subr.mxu0 %v677
    %702 = vmatpush1.msra.mxu0 %v676
    %703 = vmatprep.subr.mxu0 %v679
    %704 = vmatpush1.msra.mxu0 %v678
    %705 = vmatprep.subr.mxu0 %v681
    %706 = vmatpush1.msra.mxu0 %v680
    %707 = vmatprep.subr.mxu0 0.0
    %708 = vmatpush1.msra.mxu0 0.0
    %709 = vmatprep.subr.mxu0 0.0
    %710 = vmatpush1.msra.mxu0 0.0
    %711 = vmatprep.subr.mxu0 0.0
    %712 = vmatpush1.msra.mxu0 0.0
    %713 = vmatprep.subr.mxu0 0.0
    %714 = vmatpush1.msra.mxu0 0.0
    %715 = vmatprep.subr.mxu0 0.0
    %716 = vmatpush1.msra.mxu0 0.0
    %717 = vmatprep.subr.mxu0 0.0
    %718 = vmatpush1.msra.mxu0 0.0
    %719 = vmatprep.subr.mxu0 0.0
    %720 = vmatpush1.msra.mxu0 0.0
    %721 = vmatprep.subr.mxu0 0.0
    %722 = vmatpush1.msra.mxu0 0.0
    %723 = vmatprep.subr.mxu0 0.0
    %724 = vmatpush1.msra.mxu0 0.0
    %725 = vmatprep.subr.mxu0 0.0
    %726 = vmatpush1.msra.mxu0 0.0
    %727 = vmatprep.subr.mxu0 0.0
    %728 = vmatpush1.msra.mxu0 0.0
    %729 = vmatprep.subr.mxu0 0.0
    %730 = vmatpush1.msra.mxu0 0.0
    %731 = vmatprep.subr.mxu0 0.0
    %732 = vmatpush1.msra.mxu0 0.0
    %733 = vmatprep.subr.mxu0 0.0
    %734 = vmatpush1.msra.mxu0 0.0
    %735 = vmatprep.subr.mxu0 0.0
    %736 = vmatpush1.msra.mxu0 0.0
    %737 = vmatprep.subr.mxu0 0.0
    %738 = vmatpush1.msra.mxu0 0.0
    %739 = vmatprep.subr.mxu0 0.0
    %740 = vmatpush1.msra.mxu0 0.0
    %741 = vmatprep.subr.mxu0 0.0
    %742 = vmatpush1.msra.mxu0 0.0
    %743 = vmatprep.subr.mxu0 0.0
    %744 = vmatpush1.msra.mxu0 0.0
    %745 = vmatprep.subr.mxu0 0.0
    %746 = vmatpush1.msra.mxu0 0.0
    %747 = vmatprep.subr.mxu0 0.0
    %748 = vmatpush1.msra.mxu0 0.0
    %749 = vmatprep.subr.mxu0 0.0
    %750 = vmatpush1.msra.mxu0 0.0
    %751 = vmatprep.subr.mxu0 0.0
    %752 = vmatpush1.msra.mxu0 0.0
    %753 = vmatprep.subr.mxu0 0.0
    %754 = vmatpush1.msra.mxu0 0.0
    %755 = vmatprep.subr.mxu0 0.0
    %756 = vmatpush1.msra.mxu0 0.0
    %757 = vmatprep.subr.mxu0 0.0
    %758 = vmatpush1.msra.mxu0 0.0
    %759 = vmatprep.subr.mxu0 0.0
    %760 = vmatpush1.msra.mxu0 0.0
    %761 = vmatprep.subr.mxu0 0.0
    %762 = vmatpush1.msra.mxu0 0.0
    %763 = vmatprep.mubr.f32.mxu0 0.0
    %764 = vmatmul.mubr.f32.gmra.mrb[0].mxu0 %v697
    %v765 = vpop.f32.mrb[0].mxu0
    %v766 = vadd.f32 %v688, %v765
    %v767 = vpop.f32.mrb[0].mxu0
    %v768 = vadd.f32 %v692, %v767
    %769 = vdwg.mxu0
    %s770 = scalar_lea.vmem %s5, 6
    %v771 = vld [vmem:[%s770] ss:$8 sm:$0x3]
    %v773 = vlaneseq
    %v774 = vshrl.u32 %v773, 7
    %v775 = vsub.s32 0, %v774
    %v776 = vrot.slane %v771, %v775
    %v777 = vlaneseq
    %v778 = vshrl.u32 %v777, 7
    %v779 = vsub.s32 1, %v778
    %v780 = vrot.slane %v771, %v779
    %v783 = vmul.f32 %v766, %v776
    %v784 = vmul.f32 %v768, %v780
    %s785 = scalar_lea.vmem %s5, 7
    %v786 = vld [vmem:[%s785] ss:$8 sm:$0x3]
    %v788 = vlaneseq
    %v789 = vshrl.u32 %v788, 7
    %v790 = vsub.s32 0, %v789
    %v791 = vrot.slane %v786, %v790
    %v792 = vlaneseq
    %v793 = vshrl.u32 %v792, 7
    %v794 = vsub.s32 1, %v793
    %v795 = vrot.slane %v786, %v794
    %v798 = vadd.f32 %v783, %v791
    %v799 = vadd.f32 %v784, %v795
    %v800 = vsub.f32 0.0, %v798
    %v801 = vsub.f32 0.0, %v799
    %v802 = vmul.f32 %v800, 1.442695
    %v803 = vpow.pop %v802
    %v804 = vmul.f32 %v801, 1.442695
    %v805 = vpow.pop %v804
    %v806 = vadd.f32 %v803, 1.0
    %v807 = vadd.f32 %v805, 1.0
    %v808 = vrcp.pop %v806
    %v809 = vrcp.pop %v807
    %v810 = vmul.f32 %v798, %v808
    %v811 = vmul.f32 %v799, %v809
    %813 = vrot.lane.b32.xlu0 %v671, 64
    %v814 = vpop.permute.xlu0 %813
    %v816 = vadd.f32 %v768, %v814
    %v817 = vld [vmem:[%s5 + $0x10] ss:$0 sm:$0xff]
    %819 = vrot.lane.b32.xlu0 %v817, 64
    %v820 = vpop.permute.xlu0 %819
    %v822 = vadd.f32 %v816, %v820
    %v823 = vmax.f32 %v822, 0.0
    %v824 = vand.u32 2147483647, %v822
    %v825 = vsub.f32 0.0, %v824
    %v826 = vmul.f32 %v825, 1.442695
    %v827 = vpow.pop %v826
    %v828 = vadd.f32 %v827, 1.0
    %v829 = vlog2.pop %v828
    %v830 = vmul.f32 %v829, 0.6931472
    %v831 = vmul.f32 -0.5, %v827
    %v832 = vadd.f32 %v831, 1.0
    %v833 = vmul.f32 %v832, %v827
    %v834 = vand.u32 2147483647, %v827
    %vm835 = vcmp.lt.f32.partialorder %v834, 0.0004427343
    %v836 = vsel %vm835, %v833, %v830
    %v837 = vadd.f32 %v823, %v836
    %v838 = vld [vmem:[#allocation4 + $0xc0] sm:$0xff]
    %840 = vrot.lane.b32.xlu0 %v837, 64
    %v841 = vpop.permute.xlu0 %840
    %vm842 = vcmask 64512
    %v843 = vsel %vm842, %v841, 0
    %845 = vmatprep.subr.mxu0 0.0
    %846 = vmatpush1.msra.mxu0 %v838
    %847 = vmatprep.subr.mxu0 0.0
    %848 = vmatpush1.msra.mxu0 0.0
    %849 = vmatprep.subr.mxu0 0.0
    %850 = vmatpush1.msra.mxu0 0.0
    %851 = vmatprep.subr.mxu0 0.0
    %852 = vmatpush1.msra.mxu0 0.0
    %853 = vmatprep.subr.mxu0 0.0
    %854 = vmatpush1.msra.mxu0 0.0
    %855 = vmatprep.subr.mxu0 0.0
    %856 = vmatpush1.msra.mxu0 0.0
    %857 = vmatprep.subr.mxu0 0.0
    %858 = vmatpush1.msra.mxu0 0.0
    %859 = vmatprep.subr.mxu0 0.0
    %860 = vmatpush1.msra.mxu0 0.0
    %861 = vmatprep.subr.mxu0 0.0
    %862 = vmatpush1.msra.mxu0 0.0
    %863 = vmatprep.subr.mxu0 0.0
    %864 = vmatpush1.msra.mxu0 0.0
    %865 = vmatprep.subr.mxu0 0.0
    %866 = vmatpush1.msra.mxu0 0.0
    %867 = vmatprep.subr.mxu0 0.0
    %868 = vmatpush1.msra.mxu0 0.0
    %869 = vmatprep.subr.mxu0 0.0
    %870 = vmatpush1.msra.mxu0 0.0
    %871 = vmatprep.subr.mxu0 0.0
    %872 = vmatpush1.msra.mxu0 0.0
    %873 = vmatprep.subr.mxu0 0.0
    %874 = vmatpush1.msra.mxu0 0.0
    %875 = vmatprep.subr.mxu0 0.0
    %876 = vmatpush1.msra.mxu0 0.0
    %877 = vmatprep.subr.mxu0 0.0
    %878 = vmatpush1.msra.mxu0 0.0
    %879 = vmatprep.subr.mxu0 0.0
    %880 = vmatpush1.msra.mxu0 0.0
    %881 = vmatprep.subr.mxu0 0.0
    %882 = vmatpush1.msra.mxu0 0.0
    %883 = vmatprep.subr.mxu0 0.0
    %884 = vmatpush1.msra.mxu0 0.0
    %885 = vmatprep.subr.mxu0 0.0
    %886 = vmatpush1.msra.mxu0 0.0
    %887 = vmatprep.subr.mxu0 0.0
    %888 = vmatpush1.msra.mxu0 0.0
    %889 = vmatprep.subr.mxu0 0.0
    %890 = vmatpush1.msra.mxu0 0.0
    %891 = vmatprep.subr.mxu0 0.0
    %892 = vmatpush1.msra.mxu0 0.0
    %893 = vmatprep.subr.mxu0 0.0
    %894 = vmatpush1.msra.mxu0 0.0
    %895 = vmatprep.subr.mxu0 0.0
    %896 = vmatpush1.msra.mxu0 0.0
    %897 = vmatprep.subr.mxu0 0.0
    %898 = vmatpush1.msra.mxu0 0.0
    %899 = vmatprep.subr.mxu0 0.0
    %900 = vmatpush1.msra.mxu0 0.0
    %901 = vmatprep.subr.mxu0 0.0
    %902 = vmatpush1.msra.mxu0 0.0
    %903 = vmatprep.subr.mxu0 0.0
    %904 = vmatpush1.msra.mxu0 0.0
    %905 = vmatprep.subr.mxu0 0.0
    %906 = vmatpush1.msra.mxu0 0.0
    %907 = vmatprep.subr.mxu0 0.0
    %908 = vmatpush1.msra.mxu0 0.0
    %909 = vmatprep.mubr.f32.mxu0 0.0
    %910 = vmatmul.mubr.f32.gmra.mrb[0].mxu0 %v843
    %v911 = vpop.f32.mrb[0].mxu0
    %v912 = vadd.f32 0.0, %v911
    %v913 = vpop.f32.mrb[0].mxu0
    %914 = vdwg.mxu0
    %916 = vrot.lane.b32.xlu0 %v810, 16
    %v917 = vpop.permute.xlu0 %916
    %v919 = vmul.f32 %v810, %v917
    %921 = vrot.lane.b32.xlu0 %v919, 48
    %v922 = vpop.permute.xlu0 %921
    %vm924 = vcmask 130048
    %v925 = vsel %vm924, %v922, 0.0
    %926 = vadd.xlane.f32.xlu0 %v925
    %v927 = vpop.xlane.xlu0 %926
    %v928 = vmul.f32 %v912, %v927
    %v929 = vld [vmem:[%s5 + $0x11] ss:$0 sm:$0xff]
    %v930 = vadd.f32 %v928, %v929
    %v931 = vmul.f32 %v810, %v930
    %v932 = vmul.f32 %v931, %v811
    %v933 = vmul.f32 %v932, %v932
    %v934 = vsel %vm492, %v933, 0.0
    %935 = vadd.xlane.f32.xlu0 %v934
    %v936 = vpop.xlane.xlu0 %935
    %v937 = vrcp.pop 64.0
    %v938 = vmul.f32 %v936, %v937
    %v939 = vadd.f32 %v938, 1e-06
    %v940 = vrsqrt.pop %v939
    %v941 = vmul.f32 %v932, %v940
    %v942 = vld [vmem:[%s5 + $0x12] ss:$0 sm:$0xff]
    %v943 = vmul.f32 %v941, %v942
    %v944 = vld [vmem:[#allocation4 + $0x80] sm:$0xff]
    %v945 = vld [vmem:[#allocation4 + $0x88] sm:$0xff]
    %v946 = vld [vmem:[#allocation4 + $0x90] sm:$0xff]
    %v947 = vld [vmem:[#allocation4 + $0x98] sm:$0xff]
    %v948 = vld [vmem:[#allocation4 + $0xa0] sm:$0xff]
    %v949 = vld [vmem:[#allocation4 + $0xa8] sm:$0xff]
    %v950 = vld [vmem:[#allocation4 + $0xb0] sm:$0xff]
    %v951 = vld [vmem:[#allocation4 + $0xb8] sm:$0xff]
    %v953 = vsel %vm492, %v943, 0
    %955 = vmatprep.subr.mxu0 0.0
    %956 = vmatpush1.msra.mxu0 %v944
    %957 = vmatprep.subr.mxu0 0.0
    %958 = vmatpush1.msra.mxu0 %v945
    %959 = vmatprep.subr.mxu0 0.0
    %960 = vmatpush1.msra.mxu0 %v946
    %961 = vmatprep.subr.mxu0 0.0
    %962 = vmatpush1.msra.mxu0 %v947
    %963 = vmatprep.subr.mxu0 0.0
    %964 = vmatpush1.msra.mxu0 %v948
    %965 = vmatprep.subr.mxu0 0.0
    %966 = vmatpush1.msra.mxu0 %v949
    %967 = vmatprep.subr.mxu0 0.0
    %968 = vmatpush1.msra.mxu0 %v950
    %969 = vmatprep.subr.mxu0 0.0
    %970 = vmatpush1.msra.mxu0 %v951
    %971 = vmatprep.subr.mxu0 0.0
    %972 = vmatpush1.msra.mxu0 0.0
    %973 = vmatprep.subr.mxu0 0.0
    %974 = vmatpush1.msra.mxu0 0.0
    %975 = vmatprep.subr.mxu0 0.0
    %976 = vmatpush1.msra.mxu0 0.0
    %977 = vmatprep.subr.mxu0 0.0
    %978 = vmatpush1.msra.mxu0 0.0
    %979 = vmatprep.subr.mxu0 0.0
    %980 = vmatpush1.msra.mxu0 0.0
    %981 = vmatprep.subr.mxu0 0.0
    %982 = vmatpush1.msra.mxu0 0.0
    %983 = vmatprep.subr.mxu0 0.0
    %984 = vmatpush1.msra.mxu0 0.0
    %985 = vmatprep.subr.mxu0 0.0
    %986 = vmatpush1.msra.mxu0 0.0
    %987 = vmatprep.subr.mxu0 0.0
    %988 = vmatpush1.msra.mxu0 0.0
    %989 = vmatprep.subr.mxu0 0.0
    %990 = vmatpush1.msra.mxu0 0.0
    %991 = vmatprep.subr.mxu0 0.0
    %992 = vmatpush1.msra.mxu0 0.0
    %993 = vmatprep.subr.mxu0 0.0
    %994 = vmatpush1.msra.mxu0 0.0
    %995 = vmatprep.subr.mxu0 0.0
    %996 = vmatpush1.msra.mxu0 0.0
    %997 = vmatprep.subr.mxu0 0.0
    %998 = vmatpush1.msra.mxu0 0.0
    %999 = vmatprep.subr.mxu0 0.0
    %1000 = vmatpush1.msra.mxu0 0.0
    %1001 = vmatprep.subr.mxu0 0.0
    %1002 = vmatpush1.msra.mxu0 0.0
    %1003 = vmatprep.subr.mxu0 0.0
    %1004 = vmatpush1.msra.mxu0 0.0
    %1005 = vmatprep.subr.mxu0 0.0
    %1006 = vmatpush1.msra.mxu0 0.0
    %1007 = vmatprep.subr.mxu0 0.0
    %1008 = vmatpush1.msra.mxu0 0.0
    %1009 = vmatprep.subr.mxu0 0.0
    %1010 = vmatpush1.msra.mxu0 0.0
    %1011 = vmatprep.subr.mxu0 0.0
    %1012 = vmatpush1.msra.mxu0 0.0
    %1013 = vmatprep.subr.mxu0 0.0
    %1014 = vmatpush1.msra.mxu0 0.0
    %1015 = vmatprep.subr.mxu0 0.0
    %1016 = vmatpush1.msra.mxu0 0.0
    %1017 = vmatprep.subr.mxu0 0.0
    %1018 = vmatpush1.msra.mxu0 0.0
    %1019 = vmatprep.mubr.f32.mxu0 0.0
    %1020 = vmatmul.mubr.f32.gmra.mrb[0].mxu0 %v953
    %v1021 = vpop.f32.mrb[0].mxu0
    %v1022 = vadd.f32 0.0, %v1021
    %v1023 = vpop.f32.mrb[0].mxu0
    %1024 = vdwg.mxu0
    %1025 = vst.msk [vmem:[%s6] sm:$0xff] %vm695, %v1022
    %1026 = vst.msk [vmem:[%s7] sm:$0xff] %vm73, %v94
    %1027 = vst.msk [vmem:[%s8] sm:$0xff] %vm73, %v166
    // Predicated region
    $region34: #{continuous_mamba_block.1} parent=1 // pred_check
      _
    $region35: #{continuous_mamba_block.1} parent=1 // pred_check_branch
      %1029 = sbr.rel (0) target = $region37
    $region36: #{continuous_mamba_block.1} parent=1 // pred_region
      _
    $region37: #{continuous_mamba_block.1} parent=1 // pred_fallthru
      _
    // Predicated region
    $region38: #{continuous_mamba_block.1} parent=1 // pred_check
      _
    $region39: #{continuous_mamba_block.1} parent=1 // pred_check_branch
      %1031 = sbr.rel (0) target = $region41
    $region40: #{continuous_mamba_block.1} parent=1 // pred_region
      _
    $region41: #{continuous_mamba_block.1} parent=1 // pred_fallthru
      _
    // Predicated region
    $region42: #{continuous_mamba_block.1} parent=1 // pred_check
      _
    $region43: #{continuous_mamba_block.1} parent=1 // pred_check_branch
      %1033 = sbr.rel (0) target = $region45
    $region44: #{continuous_mamba_block.1} parent=1 // pred_region
      _
    $region45: #{continuous_mamba_block.1} parent=1 // pred_fallthru
      _
    // Predicated region
    $region46: #{continuous_mamba_block.1} parent=1 // pred_check
      _
    $region47: #{continuous_mamba_block.1} parent=1 // pred_check_branch
      %1035 = sbr.rel (0) target = $region49
    $region48: #{continuous_mamba_block.1} parent=1 // pred_region
      _
    $region49: #{continuous_mamba_block.1} parent=1 // pred_fallthru
      _
    // Predicated region
    $region50: #{continuous_mamba_block.1} parent=1 // pred_check
      _
    $region51: #{continuous_mamba_block.1} parent=1 // pred_check_branch
      %1037 = sbr.rel (0) target = $region53
    $region52: #{continuous_mamba_block.1} parent=1 // pred_region
      _
    $region53: #{continuous_mamba_block.1} parent=1 // pred_fallthru
      _
    // Predicated region
    $region54: #{continuous_mamba_block.1} parent=1 // pred_check
      _
    $region55: #{continuous_mamba_block.1} parent=1 // pred_check_branch
      %1039 = sbr.rel (0) target = $region57
    $region56: #{continuous_mamba_block.1} parent=1 // pred_region
      _
    $region57: #{continuous_mamba_block.1} parent=1 // pred_fallthru
      _
    %1040 = vsyncpa [#allocation3], 1
    %1041 = vsyncpa [#allocation5], 1

</llo_original>
